<compile_context>
chip_gen: v5e
topology: v5e:2x2
jax: 0.10.0
libtpu: 0.0.40
codegen_flags: <defaults>
</compile_context>

<pallas_src>
import functools

import jax
import jax.numpy as jnp
from jax.experimental import pallas as pl
from jax.experimental.pallas import tpu as pltpu

jax.config.update("jax_default_matmul_precision", "highest")


def _round_up(x, m):
    return ((x + m - 1) // m) * m


def _row_tile(n, cap=512):
    # cap is a multiple of 128; sized so double-buffered (tile, D) blocks fit comfortably in
    # VMEM on v5e/v6e (128 MiB) and v7x (64 MiB).
    return cap if n > cap else _round_up(max(n, 8), 8)


# ----------------------------------------------------------------------------
# Pallas kernels
# ----------------------------------------------------------------------------
def _linear_kernel(x_ref, w_ref, b_ref, o_ref):
    o_ref[...] = (jnp.dot(x_ref[...], w_ref[...], preferred_element_type=jnp.float32)
                  + b_ref[...])


def _tiled_linear(x, w, b, tile_rows):
    m, k = x.shape
    n = w.shape[1]
    return pl.pallas_call(
        _linear_kernel,
        out_shape=jax.ShapeDtypeStruct((m, n), jnp.float32),
        grid=(m // tile_rows,),
        in_specs=[pl.BlockSpec((tile_rows, k), lambda i: (i, 0)),
                  pl.BlockSpec((k, n), lambda i: (0, 0)),
                  pl.BlockSpec((1, n), lambda i: (0, 0))],
        out_specs=pl.BlockSpec((tile_rows, n), lambda i: (i, 0)),
        compiler_params=pltpu.CompilerParams(dimension_semantics=("parallel",)),
    )(x, w, b.reshape(1, n))


def _edge_fused_kernel(dst_ref, ksrc_ref, qdst_ref, vsrc_ref, ea_ref,
                       wew_ref, web_ref, bew_ref, beb_ref, aw_ref,
                       woe_ref, boe_ref, bne_ref,
                       eout_ref, wv_ref, row_ref, den_ref, *, clamp):
    # Resident (N, D) accumulators: zero on the first edge block.
    @pl.when(pl.program_id(0) == 0)
    def _init():
        wv_ref[...] = jnp.zeros_like(wv_ref)
        row_ref[...] = jnp.zeros_like(row_ref)
        den_ref[...] = jnp.zeros_like(den_ref)

    ea = ea_ref[...]                                            # (tE, in_dim)
    # fused E projection (pre-permuted weights -> lane layout h*Dh+d for both halves)
    ew = jnp.dot(ea, wew_ref[...], preferred_element_type=jnp.float32) + bew_ref[...]
    eb = jnp.dot(ea, web_ref[...], preferred_element_type=jnp.float32) + beb_ref[...]

    # signed-sqrt edge-modulated scores (head-batched, lane dim = D)
    s = (ksrc_ref[...] + qdst_ref[...]) * ew
    s = jnp.sqrt(jnp.maximum(s, 0.0)) - jnp.sqrt(jnp.maximum(-s, 0.0))
    et = jnp.maximum(s + eb, 0.0)                               # == batch_wE rows (tE, D)

    # --- edge output path fused: O_e + residual + BatchNorm1d (eval) ---
    bne = bne_ref[...]
    e = jnp.dot(et, woe_ref[...], preferred_element_type=jnp.float32) + boe_ref[...]
    e = e + ea                                                  # residual (in_dim == out_dim)
    eout_ref[...] = ((e - bne[2:3]) * jax.lax.rsqrt(bne[3:4] + 1e-5)
                     * bne[0:1] + bne[1:2])

    # --- attention: head-batched score via block-diagonal Aw (broadcast over Dh lanes),
    #     clamp, exp.  Segment max is dropped: scores are clamped to [-clamp, clamp]. ---
    raw = jnp.dot(et, aw_ref[...], preferred_element_type=jnp.float32)    # (tE, D)
    ex = jnp.exp(jnp.clip(raw, -clamp, clamp))                            # (tE, D)

    # --- scatter-add to destination nodes via a one-hot matmul over this edge tile ---
    n_nodes = wv_ref.shape[0]
    t_e = dst_ref.shape[1]
    iota = jax.lax.broadcasted_iota(jnp.int32, (n_nodes, t_e), 0)
    scat = (iota == dst_ref[...]).astype(jnp.float32)           # (Npad, tE); dst=-1 -> all-zero

    wv_ref[...] += jnp.dot(scat, vsrc_ref[...] * ex, preferred_element_type=jnp.float32)
    row_ref[...] += jnp.dot(scat, et * ex, preferred_element_type=jnp.float32)
    den_ref[...] += jnp.dot(scat, ex, preferred_element_type=jnp.float32)


def _node_fused_kernel(wv_ref, row_ref, den_ref, hres_ref, logdeg_ref,
                       verow_ref, degc_ref, woh_ref, boh_ref, bn1_ref,
                       w1_ref, b1_ref, w2_ref, b2_ref, bn2_ref, out_ref):
    # finalize segment softmax (denominator is broadcast per head across Dh lanes)
    inv = 1.0 / (den_ref[...] + 1e-16)
    wv = wv_ref[...] * inv
    row = row_ref[...] * inv
    # edge-enhanced term: block-diagonal VeRow (all heads in one matmul)
    hattn = wv + jnp.dot(row, verow_ref[...], preferred_element_type=jnp.float32)

    # degree scaler
    degc = degc_ref[...]
    hattn = hattn * degc[0:1] + (hattn * logdeg_ref[...]) * degc[1:2]

    # O_h + residual + BatchNorm1d (eval)
    x = jnp.dot(hattn, woh_ref[...], preferred_element_type=jnp.float32) + boh_ref[...]
    x = hres_ref[...] + x
    bn1 = bn1_ref[...]
    x = (x - bn1[2:3]) * jax.lax.rsqrt(bn1[3:4] + 1e-5) * bn1[0:1] + bn1[1:2]

    # FFN + residual + BatchNorm1d (eval)
    y = jnp.dot(x, w1_ref[...], preferred_element_type=jnp.float32) + b1_ref[...]
    y = jnp.maximum(y, 0.0)
    y = jnp.dot(y, w2_ref[...], preferred_element_type=jnp.float32) + b2_ref[...]
    x = x + y
    bn2 = bn2_ref[...]
    out_ref[...] = (x - bn2[2:3]) * jax.lax.rsqrt(bn2[3:4] + 1e-5) * bn2[0:1] + bn2[1:2]


# ----------------------------------------------------------------------------
# Layer forward (Pallas kernels + JAX glue for padding / gathers)
# ----------------------------------------------------------------------------
def grit_layer_forward(params, h, edge_attr, edge_index, log_deg, num_nodes,
                       num_heads, head_dim):
    H, Dh = num_heads, head_dim
    D = H * Dh
    N = num_nodes
    E = edge_index.shape[1]
    in_dim = h.shape[1]

    tile_n = _row_tile(N)
    tile_e = _row_tile(E)
    n_pad = _round_up(N, tile_n)
    e_pad = _round_up(E, tile_e)

    h_p = jnp.pad(h, ((0, n_pad - N), (0, 0)))
    logdeg_p = jnp.pad(log_deg.reshape(N, 1), ((0, n_pad - N), (0, 0)))
    ea_p = jnp.pad(edge_attr, ((0, e_pad - E), (0, 0)))
    src = jnp.pad(edge_index[0].astype(jnp.int32), (0, e_pad - E))
    # padded edges point at destination -1 -> no iota row matches -> zero contribution
    dst = jnp.pad(edge_index[1].astype(jnp.int32), (0, e_pad - E), constant_values=-1)

    # ---- fused Q/K/V projection (one wide matmul; K and V have no bias) ----
    wqkv = jnp.concatenate([params["WQ"], params["WK"], params["WV"]], axis=1)
    bqkv = jnp.concatenate([params["bQ"], jnp.zeros((2 * D,), jnp.float32)])
    qkv = _tiled_linear(h_p, wqkv, bqkv, tile_n)                 # (n_pad, 3D)
    Qh, Kh, Vh = qkv[:, :D], qkv[:, D:2 * D], qkv[:, 2 * D:]

    # ---- gather node rows onto edges (XLA glue) ----
    # TODO(synk): could stream the gathers in-kernel with scalar-prefetch index maps.
    dst_g = jnp.where(dst < 0, 0, dst)
    Ksrc = jnp.take(Kh, src, axis=0)
    Qdst = jnp.take(Qh, dst_g, axis=0)
    Vsrc = jnp.take(Vh, src, axis=0)

    # ---- parameter repack into head-batched (lane-dense) layouts ----
    eye_h = jnp.eye(H, dtype=jnp.float32)
    # E projection weights permuted so output columns are [Ew | Eb], each in h*Dh+d order.
    col = jnp.arange(2 * D).reshape(H, 2, Dh)
    perm = jnp.concatenate([col[:, 0, :].reshape(-1), col[:, 1, :].reshape(-1)])
    we_perm = params["WE"][:, perm]
    be_perm = params["bE"][perm]
    Wew, Web = we_perm[:, :D], we_perm[:, D:]
    bEw, bEb = be_perm[:D].reshape(1, D), be_perm[D:].reshape(1, D)
    # Aw -> block-diagonal (D, D), broadcast across the Dh output lanes of each head.
    aw = params["Aw"][:, :, 0].T                                 # (H, Dh)
    aw_bd = (aw[:, :, None, None] * eye_h[:, None, :, None]
             * jnp.ones((1, 1, 1, Dh), jnp.float32)).reshape(D, D)
    # VeRow -> block-diagonal (D, D).
    ve = jnp.transpose(params["VeRow"], (1, 0, 2))               # (H, Dh, Dh)
    ve_bd = (ve[:, :, None, :] * eye_h[:, None, :, None]).reshape(D, D)

    bn1e = jnp.stack([params["bn1_e_g"], params["bn1_e_b"],
                      params["bn1_e_m"], params["bn1_e_v"]])     # (4, D)
    bn1h = jnp.stack([params["bn1_h_g"], params["bn1_h_b"],
                      params["bn1_h_m"], params["bn1_h_v"]])
    bn2h = jnp.stack([params["bn2_h_g"], params["bn2_h_b"],
                      params["bn2_h_m"], params["bn2_h_v"]])

    full = lambda i: (0, 0)
    rblk = lambda i: (i, 0)

    # ---- fused edge kernel: scores + e_out + scatter accumulation ----
    dst2d = dst.reshape(1, e_pad)
    e_out_p, wv_num, row_num, den = pl.pallas_call(
        functools.partial(_edge_fused_kernel, clamp=5.0),
        out_shape=(jax.ShapeDtypeStruct((e_pad, D), jnp.float32),
                   jax.ShapeDtypeStruct((n_pad, D), jnp.float32),
                   jax.ShapeDtypeStruct((n_pad, D), jnp.float32),
                   jax.ShapeDtypeStruct((n_pad, D), jnp.float32)),
        grid=(e_pad // tile_e,),
        in_specs=[pl.BlockSpec((1, tile_e), lambda i: (0, i)),   # dst indices
                  pl.BlockSpec((tile_e, D), rblk),               # K[src]
                  pl.BlockSpec((tile_e, D), rblk),               # Q[dst]
                  pl.BlockSpec((tile_e, D), rblk),               # V[src]
                  pl.BlockSpec((tile_e, in_dim), rblk),          # edge_attr (proj in + residual)
                  pl.BlockSpec((in_dim, D), full),               # W_Ew
                  pl.BlockSpec((in_dim, D), full),               # W_Eb
                  pl.BlockSpec((1, D), full),                    # b_Ew
                  pl.BlockSpec((1, D), full),                    # b_Eb
                  pl.BlockSpec((D, D), full),                    # Aw (block-diag)
                  pl.BlockSpec((D, D), full),                    # W_Oe
                  pl.BlockSpec((1, D), full),                    # b_Oe
                  pl.BlockSpec((4, D), full)],                   # bn1_e (g,b,m,v)
        out_specs=(pl.BlockSpec((tile_e, D), rblk),
                   pl.BlockSpec((n_pad, D), full),
                   pl.BlockSpec((n_pad, D), full),
                   pl.BlockSpec((n_pad, D), full)),
        compiler_params=pltpu.CompilerParams(dimension_semantics=("arbitrary",)),
    )(dst2d, Ksrc, Qdst, Vsrc, ea_p, Wew, Web, bEw, bEb, aw_bd,
      params["WOe"], params["bOe"].reshape(1, D), bn1e)

    # ---- fused node kernel: finalize + deg scaler + O_h + BN1 + FFN + BN2 ----
    h_out_p = pl.pallas_call(
        _node_fused_kernel,
        out_shape=jax.ShapeDtypeStruct((n_pad, D), jnp.float32),
        grid=(n_pad // tile_n,),
        in_specs=[pl.BlockSpec((tile_n, D), rblk),               # wV numerator
                  pl.BlockSpec((tile_n, D), rblk),               # rowV numerator
                  pl.BlockSpec((tile_n, D), rblk),               # softmax denominator
                  pl.BlockSpec((tile_n, in_dim), rblk),          # h residual
                  pl.BlockSpec((tile_n, 1), rblk),               # log_deg
                  pl.BlockSpec((D, D), full),                    # VeRow (block-diag)
                  pl.BlockSpec((2, D), full),                    # deg_coef
                  pl.BlockSpec((D, D), full),                    # W_Oh
                  pl.BlockSpec((1, D), full),                    # b_Oh
                  pl.BlockSpec((4, D), full),                    # bn1_h
                  pl.BlockSpec((D, 2 * D), full),                # W1
                  pl.BlockSpec((1, 2 * D), full),                # b1
                  pl.BlockSpec((2 * D, D), full),                # W2
                  pl.BlockSpec((1, D), full),                    # b2
                  pl.BlockSpec((4, D), full)],                   # bn2_h
        out_specs=pl.BlockSpec((tile_n, D), rblk),
        compiler_params=pltpu.CompilerParams(dimension_semantics=("parallel",)),
    )(wv_num, row_num, den, h_p, logdeg_p, ve_bd, params["deg_coef"],
      params["WOh"], params["bOh"].reshape(1, D), bn1h,
      params["W1"], params["b1"].reshape(1, 2 * D),
      params["W2"], params["b2"].reshape(1, D), bn2h)

    return h_out_p[:N], e_out_p[:E]


# ----------------------------------------------------------------------------
# Pure-JAX reference (for correctness check)
# ----------------------------------------------------------------------------
def _bn_ref(x, g, b, m, v):
    return (x - m) * jax.lax.rsqrt(v + 1e-5) * g + b


def reference_forward(params, h, edge_attr, edge_index, log_deg, num_nodes,
                      num_heads, head_dim):
    H, Dh = num_heads, head_dim
    D = H * Dh
    src, dst = edge_index[0], edge_index[1]
    log_deg = log_deg.reshape(num_nodes, 1)
    Qh = (h @ params["WQ"] + params["bQ"]).reshape(num_nodes, H, Dh)
    Kh = (h @ params["WK"]).reshape(num_nodes, H, Dh)
    Vh = (h @ params["WV"]).reshape(num_nodes, H, Dh)
    Ep = (edge_attr @ params["WE"] + params["bE"]).reshape(-1, H, 2 * Dh)
    Ew, Eb = Ep[..., :Dh], Ep[..., Dh:]
    s = Kh[src] + Qh[dst]
    s = s * Ew
    s = jnp.sqrt(jnp.maximum(s, 0.0)) - jnp.sqrt(jnp.maximum(-s, 0.0))
    s = jnp.maximum(s + Eb, 0.0)
    et = s
    wE = et.reshape(et.shape[0], D)
    raw = jnp.einsum("ehd,dhc->ehc", et, params["Aw"])[..., 0]
    raw = jnp.clip(raw, -5.0, 5.0)
    maxes = jnp.full((num_nodes, H), -1e30, jnp.float32).at[dst].max(raw)
    ex = jnp.exp(raw - maxes[dst])
    denom = jnp.zeros((num_nodes, H), jnp.float32).at[dst].add(ex)
    attn = ex / (denom[dst] + 1e-16)
    wV = jnp.zeros((num_nodes, H, Dh), jnp.float32).at[dst].add(Vh[src] * attn[..., None])
    row = jnp.zeros((num_nodes, H, Dh), jnp.float32).at[dst].add(et * attn[..., None])
    rowV = jnp.einsum("nhd,dhc->nhc", row, params["VeRow"])
    hattn = (wV + rowV).reshape(num_nodes, D)
    hd = hattn * params["deg_coef"][0] + (hattn * log_deg) * params["deg_coef"][1]
    hd = hd @ params["WOh"] + params["bOh"]
    hcur = _bn_ref(h + hd, params["bn1_h_g"], params["bn1_h_b"],
                   params["bn1_h_m"], params["bn1_h_v"])
    e = wE @ params["WOe"] + params["bOe"] + edge_attr
    e = _bn_ref(e, params["bn1_e_g"], params["bn1_e_b"],
                params["bn1_e_m"], params["bn1_e_v"])
    hffn = jnp.maximum(hcur @ params["W1"] + params["b1"], 0.0)
    hffn = hffn @ params["W2"] + params["b2"]
    hout = _bn_ref(hcur + hffn, params["bn2_h_g"], params["bn2_h_b"],
                   params["bn2_h_m"], params["bn2_h_v"])
    return hout, e


# ----------------------------------------------------------------------------
# Deterministic parameter init
# ----------------------------------------------------------------------------
def init_params(key, in_dim, out_dim, num_heads):
    H = num_heads
    Dh = out_dim // H
    D = H * Dh
    ks = jax.random.split(key, 20)

    def xavier(k, shape, fan_in, fan_out):
        std = (2.0 / (fan_in + fan_out)) ** 0.5
        return std * jax.random.normal(k, shape, jnp.float32)

    p = {}
    p["WQ"] = xavier(ks[0], (in_dim, D), in_dim, D)
    p["bQ"] = 0.01 * jax.random.normal(ks[1], (D,), jnp.float32)
    p["WK"] = xavier(ks[2], (in_dim, D), in_dim, D)
    p["WE"] = xavier(ks[3], (in_dim, 2 * D), in_dim, 2 * D)
    p["bE"] = 0.01 * jax.random.normal(ks[4], (2 * D,), jnp.float32)
    p["WV"] = xavier(ks[5], (in_dim, D), in_dim, D)
    p["Aw"] = xavier(ks[6], (Dh, H, 1), Dh, H)
    p["VeRow"] = xavier(ks[7], (Dh, H, Dh), Dh, Dh)
    p["deg_coef"] = xavier(ks[8], (2, D), D, 2)        # row0: h, row1: h*log_deg
    p["WOh"] = xavier(ks[9], (D, out_dim), D, out_dim)
    p["bOh"] = 0.01 * jax.random.normal(ks[10], (out_dim,), jnp.float32)
    p["WOe"] = xavier(ks[11], (D, out_dim), D, out_dim)
    p["bOe"] = 0.01 * jax.random.normal(ks[12], (out_dim,), jnp.float32)
    p["W1"] = xavier(ks[13], (out_dim, 2 * out_dim), out_dim, 2 * out_dim)
    p["b1"] = 0.01 * jax.random.normal(ks[14], (2 * out_dim,), jnp.float32)
    p["W2"] = xavier(ks[15], (2 * out_dim, out_dim), 2 * out_dim, out_dim)
    p["b2"] = 0.01 * jax.random.normal(ks[16], (out_dim,), jnp.float32)
    for i, name in enumerate(["bn1_h", "bn1_e", "bn2_h"]):
        kg, kb, km, kv = jax.random.split(ks[17 + i], 4)
        p[name + "_g"] = 1.0 + 0.1 * jax.random.normal(kg, (out_dim,), jnp.float32)
        p[name + "_b"] = 0.1 * jax.random.normal(kb, (out_dim,), jnp.float32)
        p[name + "_m"] = 0.1 * jax.random.normal(km, (out_dim,), jnp.float32)
        p[name + "_v"] = jax.random.uniform(kv, (out_dim,), jnp.float32, 0.5, 1.5)
    return p


# ----------------------------------------------------------------------------
if __name__ == "__main__":
    key = jax.random.PRNGKey(0)
    N, E_NUM = 8, 24
    IN_DIM = OUT_DIM = 32
    HEADS = 4
    HEAD_DIM = OUT_DIM // HEADS

    k1, k2, k3, k4, kp = jax.random.split(key, 5)
    h = jax.random.normal(k1, (N, IN_DIM), jnp.float32)
    edge_attr = jax.random.normal(k2, (E_NUM, IN_DIM), jnp.float32)
    src = jax.random.randint(k3, (E_NUM,), 0, N, jnp.int32)
    dst = jax.random.randint(k4, (E_NUM,), 0, N, jnp.int32)
    edge_index = jnp.stack([src, dst])
    deg = jnp.zeros((N,), jnp.float32).at[dst].add(1.0)
    log_deg = jnp.log1p(deg)        # node-degree feature

    params = init_params(kp, IN_DIM, OUT_DIM, HEADS)

    h_out, e_out = grit_layer_forward(params, h, edge_attr, edge_index,
                                      log_deg, N, HEADS, HEAD_DIM)
    jax.block_until_ready((h_out, e_out))

    h_ref, e_ref = reference_forward(params, h, edge_attr, edge_index,
                                     log_deg, N, HEADS, HEAD_DIM)
    assert h_out.shape == (N, OUT_DIM) and e_out.shape == (E_NUM, OUT_DIM)
    assert jnp.allclose(h_out, h_ref, rtol=1e-2, atol=1e-3), "node output mismatch"
    assert jnp.allclose(e_out, e_ref, rtol=1e-2, atol=1e-3), "edge output mismatch"
    print("KERNEL_OK")
</pallas_src>

<mosaic_0001>
module attributes {stable_mosaic.version = 11 : i64} {
  func.func @_linear_kernel(%arg0: i32, %arg1: memref<8x32xf32, #tpu.memory_space<vmem>>, %arg2: memref<32x96xf32, #tpu.memory_space<vmem>>, %arg3: memref<1x96xf32, #tpu.memory_space<vmem>>, %arg4: memref<8x96xf32, #tpu.memory_space<vmem>>) attributes {dimension_semantics = [#tpu.dimension_semantics<parallel>], iteration_bounds = array<i64: 1>, scalar_prefetch = 0 : i64, scratch_operands = 0 : i64, tpu.core_type = #tpu.core_type<tc>, window_params = [{transform_indices = @transform_0, window_bounds = array<i64: 8, 32>}, {pipeline_mode = #tpu.pipeline_mode<synchronous>, transform_indices = @transform_1, window_bounds = array<i64: 32, 96>}, {pipeline_mode = #tpu.pipeline_mode<synchronous>, transform_indices = @transform_2, window_bounds = array<i64: 1, 96>}, {transform_indices = @transform_3, window_bounds = array<i64: 8, 96>}]} {
    %c0 = arith.constant 0 : index
    %c0_0 = arith.constant 0 : index
    %0 = vector.load %arg1[%c0, %c0_0] : memref<8x32xf32, #tpu.memory_space<vmem>>, vector<8x32xf32>
    %c0_1 = arith.constant 0 : index
    %c0_2 = arith.constant 0 : index
    %1 = vector.load %arg2[%c0_1, %c0_2] : memref<32x96xf32, #tpu.memory_space<vmem>>, vector<32x96xf32>
    %cst = arith.constant dense<0.000000e+00> : vector<8x96xf32>
    %2 = tpu.matmul %0, %1, %cst {dimension_numbers = #tpu.dot_dimension_numbers<[1], [0], [0], [1], [0, 0, 1, 1], [], []>, precision = #tpu.contract_precision<fp32>} : vector<8x32xf32>, vector<32x96xf32>, vector<8x96xf32> -> vector<8x96xf32>
    %c0_3 = arith.constant 0 : index
    %c0_4 = arith.constant 0 : index
    %3 = vector.load %arg3[%c0_3, %c0_4] : memref<1x96xf32, #tpu.memory_space<vmem>>, vector<1x96xf32>
    %4 = vector.broadcast %3 : vector<1x96xf32> to vector<8x96xf32>
    %5 = arith.addf %2, %4 : vector<8x96xf32>
    %c0_5 = arith.constant 0 : index
    %c0_6 = arith.constant 0 : index
    %6 = vector.load %arg4[%c0_5, %c0_6] : memref<8x96xf32, #tpu.memory_space<vmem>>, vector<8x96xf32>
    tpu.vector_store %arg4[%c0_5, %c0_6], %5 {strides = array<i32>} : memref<8x96xf32, #tpu.memory_space<vmem>>, vector<8x96xf32>,
    return
  }
  func.func @transform_0(%arg0: i32) -> (i32, i32) {
    %c0_i32 = arith.constant 0 : i32
    %c0_i32_0 = arith.constant 0 : i32
    return %arg0, %c0_i32 : i32, i32
  }
  func.func @transform_1(%arg0: i32) -> (i32, i32) {
    %c0_i32 = arith.constant 0 : i32
    %c0_i32_0 = arith.constant 0 : i32
    %c0_i32_1 = arith.constant 0 : i32
    return %c0_i32, %c0_i32_0 : i32, i32
  }
  func.func @transform_2(%arg0: i32) -> (i32, i32) {
    %c0_i32 = arith.constant 0 : i32
    %c0_i32_0 = arith.constant 0 : i32
    %c0_i32_1 = arith.constant 0 : i32
    return %c0_i32, %c0_i32_0 : i32, i32
  }
  func.func @transform_3(%arg0: i32) -> (i32, i32) {
    %c0_i32 = arith.constant 0 : i32
    %c0_i32_0 = arith.constant 0 : i32
    return %arg0, %c0_i32 : i32, i32
  }
}

</mosaic_0001>

<llo_original>
// kernel: tpu_custom_call.1
$region0: #{tpu_custom_call.1}
  #allocation0 [shape = 'u32[]', space=smem, size = 0x4, offset = 0x4, fixed_abs, tag = 'smem constant byte address 0x4 - core index']
  #allocation1 [shape = 'u32[72,128]{1,0:T(1,128)}', space=vmem, size = 0x9000, scoped, tag = 'internal scratch']
  %s0 = inlined_call_operand.hbm [shape: f32[8,32], index: 0, kind: input, shape index: {}]
  %s1 = inlined_call_operand.hbm [shape: f32[32,96], index: 1, kind: input, shape index: {}]
  %s2 = inlined_call_operand.vmem [shape: f32[1,96], index: 2, kind: input, shape index: {}]
  %s3 = inlined_call_operand.hbm [shape: f32[8,96], index: 3, kind: output, shape index: {}]
  %s4 = sld [smem:[#allocation0]]
  $region30: #{tpu_custom_call.1} parent=0
    _
  %s6 = ssub.s32 1, %s4
  %s7 = scalar_select 0, %s6, %s4
  $region1: #{tpu_custom_call.1} parent=0
    #allocation2 [shape = 'u8[4096]{0}', space=vmem, size = 0x1000, scoped, tag = 'input window, operand 0, single buffered']
    #allocation3 [shape = 's32[1]{0}', space=sflag, size = 0x4, scoped, tag = 'scoped memory for tpu_custom_call.1']
    #allocation4 [shape = 's32[1]{0}', space=sflag, size = 0x4, scoped, tag = 'scoped memory for tpu_custom_call.1']
    #allocation5 [shape = 'u8[16384]{0}', space=vmem, size = 0x4000, scoped, tag = 'input window, operand 1, single buffered']
    #allocation6 [shape = 's32[1]{0}', space=sflag, size = 0x4, scoped, tag = 'scoped memory for tpu_custom_call.1']
    #allocation7 [shape = 'u8[4096]{0}', space=vmem, size = 0x1000, scoped, tag = 'output window, operand 0, single buffered']
    %8 = vsyncpa [#allocation3], 0
    %9 = vsyncpa [#allocation6], 0
    %10 = vsyncpa [#allocation4], 0
    // Predicated region
    $region2: #{tpu_custom_call.1} parent=1 // pred_check
      _
    $region3: #{tpu_custom_call.1} parent=1 // pred_check_branch
      %12 = sbr.rel (0) target = $region5
    $region4: #{tpu_custom_call.1} parent=1 // pred_region
      %14 = vsyncadd [#allocation3], 0
      %s16 = sshll.u32 %s0, 4
      %s17 = int_to_ptr.hbm [resolvable:$true] %s16
      %s18 = sshll.u32 [#allocation2], 4
      %s19 = int_to_ptr.vmem [resolvable:$true] %s18
      %21 = dma.hbm_to_vmem [thread:$0]  %s17, 128, %s19, [#allocation3]
    $region5: #{tpu_custom_call.1} parent=1 // pred_fallthru
      _
    // Predicated region
    $region6: #{tpu_custom_call.1} parent=1 // pred_check
      _
    $region7: #{tpu_custom_call.1} parent=1 // pred_check_branch
      %23 = sbr.rel (0) target = $region9
    $region8: #{tpu_custom_call.1} parent=1 // pred_region
      %25 = vsyncadd [#allocation6], 0
      %s26 = sshll.u32 %s1, 4
      %s27 = int_to_ptr.hbm [resolvable:$true] %s26
      %s28 = sshll.u32 [#allocation5], 4
      %s29 = int_to_ptr.vmem [resolvable:$true] %s28
      %34 = dma.hbm_to_vmem [thread:$0]  %s27, 512, %s29, [#allocation6], 128, 128, 8
    $region9: #{tpu_custom_call.1} parent=1 // pred_fallthru
      _
    // Predicated region
    $region10: #{tpu_custom_call.1} parent=1 // pred_check
      _
    $region11: #{tpu_custom_call.1} parent=1 // pred_check_branch
      %36 = sbr.rel (0) target = $region13
    $region12: #{tpu_custom_call.1} parent=1 // pred_region
      _
    $region13: #{tpu_custom_call.1} parent=1 // pred_fallthru
      _
    // Predicated region
    $region14: #{tpu_custom_call.1} parent=1 // pred_check
      _
    $region15: #{tpu_custom_call.1} parent=1 // pred_check_branch
      %38 = sbr.rel (0) target = $region17
    $region16: #{tpu_custom_call.1} parent=1 // pred_region
      %40 = dma.done [#allocation3], 128
    $region17: #{tpu_custom_call.1} parent=1 // pred_fallthru
      _
    // Predicated region
    $region18: #{tpu_custom_call.1} parent=1 // pred_check
      _
    $region19: #{tpu_custom_call.1} parent=1 // pred_check_branch
      %42 = sbr.rel (0) target = $region21
    $region20: #{tpu_custom_call.1} parent=1 // pred_region
      %44 = dma.done [#allocation6], 512
    $region21: #{tpu_custom_call.1} parent=1 // pred_fallthru
      _
    %v45 = vld [vmem:[#allocation2] sm:$0xff]
    %v46 = vld [vmem:[#allocation5] sm:$0xff]
    %v47 = vld [vmem:[#allocation5 + $0x8] sm:$0xff]
    %v48 = vld [vmem:[#allocation5 + $0x10] sm:$0xff]
    %v49 = vld [vmem:[#allocation5 + $0x18] sm:$0xff]
    %v50 = vld [vmem:[%s2] sm:$0x1]
    %v52 = vperm.slane %v50, 0
    %vm54 = vcmask 261120
    %v56 = vsel %vm54, %v45, 0
    %58 = vmatpush.msra.mxu0 0.0
    %59 = vmatpush.msra.mxu0 0.0
    %60 = vmatpush.msra.mxu0 0.0
    %61 = vmatpush.msra.mxu0 0.0
    %62 = vmatpush.msra.mxu0 0.0
    %63 = vmatpush.msra.mxu0 0.0
    %64 = vmatpush.msra.mxu0 0.0
    %65 = vmatpush.msra.mxu0 0.0
    %66 = vmatpush.msra.mxu0 0.0
    %67 = vmatpush.msra.mxu0 0.0
    %68 = vmatpush.msra.mxu0 0.0
    %69 = vmatpush.msra.mxu0 0.0
    %v70 = vand.u32 %v49, 4294901760
    %71 = vmatpush.msra.mxu0 %v70
    %v72 = vand.u32 %v48, 4294901760
    %73 = vmatpush.msra.mxu0 %v72
    %v74 = vand.u32 %v47, 4294901760
    %75 = vmatpush.msra.mxu0 %v74
    %v76 = vand.u32 %v46, 4294901760
    %77 = vmatpush.msra.mxu0 %v76
    %v78 = vand.u32 %v56, 4294901760
    %v79 = vsub.f32 %v56, %v78
    %v80 = vand.u32 %v79, 4294901760
    %v81 = vsub.f32 %v79, %v80
    %v82 = vand.u32 %v81, 4294901760
    %83 = vmatmul.f32.gmra.mxu0 %v82
    %v84 = vpop.f32.mrf.mxu0
    %v85 = vadd.f32 %v52, %v84
    %86 = vdwg.mxu0
    %87 = vmatpush.msra.mxu0 0.0
    %88 = vmatpush.msra.mxu0 0.0
    %89 = vmatpush.msra.mxu0 0.0
    %90 = vmatpush.msra.mxu0 0.0
    %91 = vmatpush.msra.mxu0 0.0
    %92 = vmatpush.msra.mxu0 0.0
    %93 = vmatpush.msra.mxu0 0.0
    %94 = vmatpush.msra.mxu0 0.0
    %95 = vmatpush.msra.mxu0 0.0
    %96 = vmatpush.msra.mxu0 0.0
    %97 = vmatpush.msra.mxu0 0.0
    %98 = vmatpush.msra.mxu0 0.0
    %v99 = vand.u32 %v49, 4294901760
    %v100 = vsub.f32 %v49, %v99
    %v101 = vand.u32 %v100, 4294901760
    %v102 = vsub.f32 %v100, %v101
    %v103 = vand.u32 %v102, 4294901760
    %104 = vmatpush.msra.mxu0 %v103
    %v105 = vand.u32 %v48, 4294901760
    %v106 = vsub.f32 %v48, %v105
    %v107 = vand.u32 %v106, 4294901760
    %v108 = vsub.f32 %v106, %v107
    %v109 = vand.u32 %v108, 4294901760
    %110 = vmatpush.msra.mxu0 %v109
    %v111 = vand.u32 %v47, 4294901760
    %v112 = vsub.f32 %v47, %v111
    %v113 = vand.u32 %v112, 4294901760
    %v114 = vsub.f32 %v112, %v113
    %v115 = vand.u32 %v114, 4294901760
    %116 = vmatpush.msra.mxu0 %v115
    %v117 = vand.u32 %v46, 4294901760
    %v118 = vsub.f32 %v46, %v117
    %v119 = vand.u32 %v118, 4294901760
    %v120 = vsub.f32 %v118, %v119
    %v121 = vand.u32 %v120, 4294901760
    %122 = vmatpush.msra.mxu0 %v121
    %v123 = vand.u32 %v56, 4294901760
    %124 = vmatmul.f32.gmra.mxu0 %v123
    %v125 = vpop.f32.mrf.mxu0
    %v126 = vadd.f32 %v85, %v125
    %127 = vdwg.mxu0
    %128 = vmatpush.msra.mxu0 0.0
    %129 = vmatpush.msra.mxu0 0.0
    %130 = vmatpush.msra.mxu0 0.0
    %131 = vmatpush.msra.mxu0 0.0
    %132 = vmatpush.msra.mxu0 0.0
    %133 = vmatpush.msra.mxu0 0.0
    %134 = vmatpush.msra.mxu0 0.0
    %135 = vmatpush.msra.mxu0 0.0
    %136 = vmatpush.msra.mxu0 0.0
    %137 = vmatpush.msra.mxu0 0.0
    %138 = vmatpush.msra.mxu0 0.0
    %139 = vmatpush.msra.mxu0 0.0
    %v140 = vand.u32 %v49, 4294901760
    %v141 = vsub.f32 %v49, %v140
    %142 = vmatpush.msra.mxu0 %v141
    %v143 = vand.u32 %v48, 4294901760
    %v144 = vsub.f32 %v48, %v143
    %145 = vmatpush.msra.mxu0 %v144
    %v146 = vand.u32 %v47, 4294901760
    %v147 = vsub.f32 %v47, %v146
    %148 = vmatpush.msra.mxu0 %v147
    %v149 = vand.u32 %v46, 4294901760
    %v150 = vsub.f32 %v46, %v149
    %151 = vmatpush.msra.mxu0 %v150
    %v152 = vand.u32 %v56, 4294901760
    %v153 = vsub.f32 %v56, %v152
    %154 = vmatmul.f32.gmra.mxu0 %v153
    %v155 = vpop.f32.mrf.mxu0
    %v156 = vadd.f32 %v126, %v155
    %157 = vdwg.mxu0
    %158 = vmatpush.msra.mxu0 0.0
    %159 = vmatpush.msra.mxu0 0.0
    %160 = vmatpush.msra.mxu0 0.0
    %161 = vmatpush.msra.mxu0 0.0
    %162 = vmatpush.msra.mxu0 0.0
    %163 = vmatpush.msra.mxu0 0.0
    %164 = vmatpush.msra.mxu0 0.0
    %165 = vmatpush.msra.mxu0 0.0
    %166 = vmatpush.msra.mxu0 0.0
    %167 = vmatpush.msra.mxu0 0.0
    %168 = vmatpush.msra.mxu0 0.0
    %169 = vmatpush.msra.mxu0 0.0
    %v170 = vand.u32 %v49, 4294901760
    %171 = vmatpush.msra.mxu0 %v170
    %v172 = vand.u32 %v48, 4294901760
    %173 = vmatpush.msra.mxu0 %v172
    %v174 = vand.u32 %v47, 4294901760
    %175 = vmatpush.msra.mxu0 %v174
    %v176 = vand.u32 %v46, 4294901760
    %177 = vmatpush.msra.mxu0 %v176
    %v178 = vand.u32 %v56, 4294901760
    %v179 = vsub.f32 %v56, %v178
    %v180 = vand.u32 %v179, 4294901760
    %181 = vmatmul.f32.gmra.mxu0 %v180
    %v182 = vpop.f32.mrf.mxu0
    %v183 = vadd.f32 %v156, %v182
    %184 = vdwg.mxu0
    %185 = vmatpush.msra.mxu0 0.0
    %186 = vmatpush.msra.mxu0 0.0
    %187 = vmatpush.msra.mxu0 0.0
    %188 = vmatpush.msra.mxu0 0.0
    %189 = vmatpush.msra.mxu0 0.0
    %190 = vmatpush.msra.mxu0 0.0
    %191 = vmatpush.msra.mxu0 0.0
    %192 = vmatpush.msra.mxu0 0.0
    %193 = vmatpush.msra.mxu0 0.0
    %194 = vmatpush.msra.mxu0 0.0
    %195 = vmatpush.msra.mxu0 0.0
    %196 = vmatpush.msra.mxu0 0.0
    %v197 = vand.u32 %v49, 4294901760
    %v198 = vsub.f32 %v49, %v197
    %v199 = vand.u32 %v198, 4294901760
    %200 = vmatpush.msra.mxu0 %v199
    %v201 = vand.u32 %v48, 4294901760
    %v202 = vsub.f32 %v48, %v201
    %v203 = vand.u32 %v202, 4294901760
    %204 = vmatpush.msra.mxu0 %v203
    %v205 = vand.u32 %v47, 4294901760
    %v206 = vsub.f32 %v47, %v205
    %v207 = vand.u32 %v206, 4294901760
    %208 = vmatpush.msra.mxu0 %v207
    %v209 = vand.u32 %v46, 4294901760
    %v210 = vsub.f32 %v46, %v209
    %v211 = vand.u32 %v210, 4294901760
    %212 = vmatpush.msra.mxu0 %v211
    %v213 = vand.u32 %v56, 4294901760
    %214 = vmatmul.f32.gmra.mxu0 %v213
    %v215 = vpop.f32.mrf.mxu0
    %v216 = vadd.f32 %v183, %v215
    %217 = vdwg.mxu0
    %218 = vmatpush.msra.mxu0 0.0
    %219 = vmatpush.msra.mxu0 0.0
    %220 = vmatpush.msra.mxu0 0.0
    %221 = vmatpush.msra.mxu0 0.0
    %222 = vmatpush.msra.mxu0 0.0
    %223 = vmatpush.msra.mxu0 0.0
    %224 = vmatpush.msra.mxu0 0.0
    %225 = vmatpush.msra.mxu0 0.0
    %226 = vmatpush.msra.mxu0 0.0
    %227 = vmatpush.msra.mxu0 0.0
    %228 = vmatpush.msra.mxu0 0.0
    %229 = vmatpush.msra.mxu0 0.0
    %v230 = vand.u32 %v49, 4294901760
    %231 = vmatpush.msra.mxu0 %v230
    %v232 = vand.u32 %v48, 4294901760
    %233 = vmatpush.msra.mxu0 %v232
    %v234 = vand.u32 %v47, 4294901760
    %235 = vmatpush.msra.mxu0 %v234
    %v236 = vand.u32 %v46, 4294901760
    %237 = vmatpush.msra.mxu0 %v236
    %v238 = vand.u32 %v56, 4294901760
    %239 = vmatmul.f32.gmra.mxu0 %v238
    %v240 = vpop.f32.mrf.mxu0
    %v241 = vadd.f32 %v216, %v240
    %242 = vdwg.mxu0
    %vm243 = vcmask 785408
    %244 = vst.msk [vmem:[#allocation7] sm:$0xff] %vm243, %v241
    // Predicated region
    $region22: #{tpu_custom_call.1} parent=1 // pred_check
      _
    $region23: #{tpu_custom_call.1} parent=1 // pred_check_branch
      %246 = sbr.rel (0) target = $region25
    $region24: #{tpu_custom_call.1} parent=1 // pred_region
      %248 = vsyncadd [#allocation4], 0
      %s250 = sshll.u32 [#allocation7], 4
      %s251 = int_to_ptr.vmem [resolvable:$true] %s250
      %s252 = sshll.u32 %s3, 4
      %s253 = int_to_ptr.hbm [resolvable:$true] %s252
      %255 = dma.vmem_to_hbm [thread:$0]  %s251, 128, %s253, [#allocation4]
    $region25: #{tpu_custom_call.1} parent=1 // pred_fallthru
      _
    // Predicated region
    $region26: #{tpu_custom_call.1} parent=1 // pred_check
      _
    $region27: #{tpu_custom_call.1} parent=1 // pred_check_branch
      %257 = sbr.rel (0) target = $region29
    $region28: #{tpu_custom_call.1} parent=1 // pred_region
      %259 = dma.done [#allocation4], 128
    $region29: #{tpu_custom_call.1} parent=1 // pred_fallthru
      _
    %260 = vsyncpa [#allocation3], 1
    %261 = vsyncpa [#allocation6], 1
    %262 = vsyncpa [#allocation4], 1

</llo_original>
